<compile_context>
chip_gen: v6e
topology: v6e:2x2x1
jax: 0.10.0
libtpu: 0.0.40
codegen_flags: <defaults>
</compile_context>

<pallas_src>
import functools

import jax
import jax.numpy as jnp
from jax.experimental import pallas as pl
from jax.experimental.pallas import tpu as pltpu

_TARGET_BLOCK_BYTES = 6 * 1024 * 1024   # ~6 MiB per block (per grid step)
_VMEM_LIMIT_FLOOR = 32 * 1024 * 1024    # >= default on v6e/v7x, > v5e default
_VMEM_LIMIT_CAP = 48 * 1024 * 1024      # stay under v7x's 64 MiB physical VMEM


def _cdiv(a, b):
    return -(-a // b)


def _sublane_tile(dtype):
    itemsize = jnp.dtype(dtype).itemsize
    return 8 * max(1, 4 // itemsize)     # 8 (f32) / 16 (bf16) / 32 (int8)


def _pick_pack_factor(G, num_D, dtype):
    """How many capsule groups to pack per sublane tile (1 = no packing)."""
    sub = _sublane_tile(dtype)
    if num_D >= sub:
        return 1
    k_max = max(1, sub // num_D)
    for k in range(k_max, 1, -1):
        if G % k == 0:
            return k
    return 1


def _squash_kernel(x_ref, o_ref, *, eps: float, num_D: int, k: int):
    # x_ref / o_ref: (tg, k*num_D, HW) tile; k groups of num_D consecutive sublanes.
    for j in range(k):  # static unroll, k is small (<= 8)
        sl = slice(j * num_D, (j + 1) * num_D)
        # Cast to f32 BEFORE squaring (free: kernel is HBM-bound, VALU has slack).
        x = x_ref[:, sl, :].astype(jnp.float32)
        sq = jnp.sum(x * x, axis=1, keepdims=True)        # (tg, 1, HW) sublane reduce
        # scale = length / (1 + eps + length^2); exact divide (EUP, slack is free).
        scale = jnp.sqrt(sq) / (1.0 + eps + sq)
        o_ref[:, sl, :] = (x * scale).astype(o_ref.dtype)


def squash_pallas(x, num_C: int, num_D: int, eps: float = 0.0001):
    """x: (B, C, H, W) with C == num_C * num_D. Returns same shape/dtype."""
    B, C, H, W = x.shape
    assert C == num_C * num_D, "channel dim must equal num_C * num_D"
    HW = H * W
    G = B * num_C
    itemsize = jnp.dtype(x.dtype).itemsize

    # Sublane packing: k capsule groups per tile (dense DMA / VMEM for small num_D).
    k = _pick_pack_factor(G, num_D, x.dtype)
    Gp = G // k
    KD = k * num_D

    # Pure-view reshape: (B, C, H, W) -> (G/k, k*num_D, H*W). No data movement,
    # no padding, no post-call slicing.
    x_g = x.reshape(Gp, KD, HW)

    # Block sizing: fuse many groups per grid step.  Single step for tiny
    # tensors; otherwise split into an even number of steps (v7x 2-TC balance)
    # sized to ~_TARGET_BLOCK_BYTES each.
    bytes_per_group = KD * HW * itemsize
    total_bytes = Gp * bytes_per_group
    if total_bytes <= _TARGET_BLOCK_BYTES or Gp <= 1:
        tg = Gp
    else:
        n_steps = _cdiv(total_bytes, _TARGET_BLOCK_BYTES)
        n_steps += n_steps % 2            # even grid for megacore balance
        n_steps = min(n_steps, Gp)
        tg = _cdiv(Gp, n_steps)
    grid_g = _cdiv(Gp, tg)

    # Working set: in + out, each double-buffered = 4 live blocks (+ headroom).
    block_bytes = tg * bytes_per_group
    vmem_limit = int(
        min(_VMEM_LIMIT_CAP, max(_VMEM_LIMIT_FLOOR, 4 * block_bytes + (2 << 20)))
    )

    kernel = functools.partial(_squash_kernel, eps=float(eps), num_D=num_D, k=k)

    out_g = pl.pallas_call(
        kernel,
        out_shape=jax.ShapeDtypeStruct((Gp, KD, HW), x.dtype),
        grid_spec=pltpu.PrefetchScalarGridSpec(
            num_scalar_prefetch=0,
            grid=(grid_g,),
            # Last two block dims equal the array dims -> legal for any num_D/HW.
            in_specs=[pl.BlockSpec((tg, KD, HW), lambda g: (g, 0, 0))],
            out_specs=pl.BlockSpec((tg, KD, HW), lambda g: (g, 0, 0)),
        ),
        compiler_params=pltpu.CompilerParams(
            dimension_semantics=("parallel",),
            vmem_limit_bytes=vmem_limit,
        ),
    )(x_g)

    return out_g.reshape(B, C, H, W)


def squash_ref(x, num_C: int, num_D: int, eps: float = 0.0001):
    B, C, H, W = x.shape
    xc = x.reshape(B, num_C, num_D, H, W).astype(jnp.float32)
    length = jnp.sqrt(jnp.sum(xc * xc, axis=2, keepdims=True))
    out = xc * length / (1.0 + eps + length * length)
    return out.reshape(B, C, H, W).astype(x.dtype)


if __name__ == "__main__":
    key = jax.random.PRNGKey(0)

    # Case 1: canonical f32 case (num_D == f32 sublane tile, 128-aligned HW).
    B, num_C, num_D, H, W = 2, 4, 8, 16, 16
    C = num_C * num_D
    x = jax.random.normal(key, (B, C, H, W), dtype=jnp.float32)
    out = jax.block_until_ready(squash_pallas(x, num_C, num_D))
    ref = squash_ref(x, num_C, num_D)
    assert out.shape == (B, C, H, W)
    assert jnp.allclose(out, ref, atol=1e-5, rtol=1e-5), float(
        jnp.max(jnp.abs(out - ref))
    )

    # Case 2: bf16 input -> exercises the sublane-packing path (k = 2).
    xb = jax.random.normal(key, (B, C, H, W), dtype=jnp.float32).astype(jnp.bfloat16)
    outb = jax.block_until_ready(squash_pallas(xb, num_C, num_D))
    refb = squash_ref(xb, num_C, num_D)
    assert jnp.allclose(
        outb.astype(jnp.float32), refb.astype(jnp.float32), atol=2e-2, rtol=2e-2
    )

    # Case 3: non-128-aligned spatial dim -> masked lane tail, no host pad/slice.
    x3 = jax.random.normal(key, (2, C, 10, 10), dtype=jnp.float32)
    out3 = jax.block_until_ready(squash_pallas(x3, num_C, num_D))
    ref3 = squash_ref(x3, num_C, num_D)
    assert jnp.allclose(out3, ref3, atol=1e-5, rtol=1e-5)

    print("KERNEL_OK")
</pallas_src>

<mosaic_0001>
module attributes {stable_mosaic.version = 11 : i64} {
  func.func @_squash_kernel(%arg0: i32, %arg1: memref<8x8x256xf32, #tpu.memory_space<vmem>>, %arg2: memref<8x8x256xf32, #tpu.memory_space<vmem>>) attributes {dimension_semantics = [#tpu.dimension_semantics<parallel>], iteration_bounds = array<i64: 1>, scalar_prefetch = 0 : i64, scratch_operands = 0 : i64, tpu.core_type = #tpu.core_type<tc>, window_params = [{transform_indices = @transform_0, window_bounds = array<i64: 8, 8, 256>}, {transform_indices = @transform_1, window_bounds = array<i64: 8, 8, 256>}]} {
    %c0 = arith.constant 0 : index
    %c0_0 = arith.constant 0 : index
    %c0_1 = arith.constant 0 : index
    %0 = vector.load %arg1[%c0, %c0_0, %c0_1] : memref<8x8x256xf32, #tpu.memory_space<vmem>>, vector<8x8x256xf32>
    %1 = arith.mulf %0, %0 : vector<8x8x256xf32>
    %cst = arith.constant dense<0.000000e+00> : vector<8x256xf32>
    %2 = vector.multi_reduction <add>, %1, %cst [1] : vector<8x8x256xf32> to vector<8x256xf32>
    %3 = vector.shape_cast %2 : vector<8x256xf32> to vector<8x1x256xf32>
    %4 = math.sqrt %3 : vector<8x1x256xf32>
    %cst_2 = arith.constant 1.000100e+00 : f32
    %5 = vector.broadcast %cst_2 : f32 to vector<8x1x256xf32>
    %6 = arith.addf %5, %3 : vector<8x1x256xf32>
    %7 = arith.divf %4, %6 : vector<8x1x256xf32>
    %8 = vector.broadcast %7 : vector<8x1x256xf32> to vector<8x8x256xf32>
    %9 = arith.mulf %0, %8 : vector<8x8x256xf32>
    %c0_3 = arith.constant 0 : index
    %c0_4 = arith.constant 0 : index
    %c0_5 = arith.constant 0 : index
    %10 = vector.load %arg2[%c0_3, %c0_4, %c0_5] : memref<8x8x256xf32, #tpu.memory_space<vmem>>, vector<8x8x256xf32>
    tpu.vector_store %arg2[%c0_3, %c0_4, %c0_5], %9 {strides = array<i32>} : memref<8x8x256xf32, #tpu.memory_space<vmem>>, vector<8x8x256xf32>,
    return
  }
  func.func @transform_0(%arg0: i32) -> (i32, i32, i32) {
    %c0_i32 = arith.constant 0 : i32
    %c0_i32_0 = arith.constant 0 : i32
    %c0_i32_1 = arith.constant 0 : i32
    return %arg0, %c0_i32, %c0_i32_0 : i32, i32, i32
  }
  func.func @transform_1(%arg0: i32) -> (i32, i32, i32) {
    %c0_i32 = arith.constant 0 : i32
    %c0_i32_0 = arith.constant 0 : i32
    %c0_i32_1 = arith.constant 0 : i32
    return %arg0, %c0_i32, %c0_i32_0 : i32, i32, i32
  }
}

</mosaic_0001>

<llo_original>
// kernel: tpu_custom_call.1
$region0: #{tpu_custom_call.1}
  #allocation0 [shape = 'u32[]', space=smem, size = 0x4, offset = 0x4, fixed_abs, tag = 'smem constant byte address 0x4 - core index']
  #allocation1 [shape = 'u32[144,128]{1,0:T(1,128)}', space=vmem, size = 0x12000, scoped, tag = 'internal scratch']
  %s0 = inlined_call_operand.hbm [shape: f32[8,8,256], index: 0, kind: input, shape index: {}]
  %s1 = inlined_call_operand.hbm [shape: f32[8,8,256], index: 1, kind: output, shape index: {}]
  %s2 = sld [smem:[#allocation0]]
  $region18: #{tpu_custom_call.1} parent=0
    _
  %s4 = ssub.s32 1, %s2
  %s5 = scalar_select 0, %s4, %s2
  $region1: #{tpu_custom_call.1} parent=0
    #allocation2 [shape = 'u8[65536]{0}', space=vmem, size = 0x10000, scoped, tag = 'input window, operand 0, single buffered']
    #allocation3 [shape = 's32[1]{0}', space=sflag, size = 0x4, scoped, tag = 'scoped memory for tpu_custom_call.1']
    #allocation4 [shape = 's32[1]{0}', space=sflag, size = 0x4, scoped, tag = 'scoped memory for tpu_custom_call.1']
    #allocation5 [shape = 'u8[65536]{0}', space=vmem, size = 0x10000, scoped, tag = 'output window, operand 0, single buffered']
    %6 = vsyncpa [#allocation3], 0
    %7 = vsyncpa [#allocation4], 0
    // Predicated region
    $region2: #{tpu_custom_call.1} parent=1 // pred_check
      _
    $region3: #{tpu_custom_call.1} parent=1 // pred_check_branch
      %9 = sbr.rel (0) target = $region5
    $region4: #{tpu_custom_call.1} parent=1 // pred_region
      %s11 = ssub.s32 2048, 2048
      %12 = vsyncadd [#allocation3], %s11
      %s13 = sshll.u32 [#allocation2], 4
      %s14 = int_to_ptr.vmem [resolvable:$true] %s13
      %19 = dma.hbm_to_vmem [thread:$0]  %s0, 2048, %s14, [#allocation3], 256, 256, 16
    $region5: #{tpu_custom_call.1} parent=1 // pred_fallthru
      _
    // Predicated region
    $region6: #{tpu_custom_call.1} parent=1 // pred_check
      _
    $region7: #{tpu_custom_call.1} parent=1 // pred_check_branch
      %21 = sbr.rel (0) target = $region9
    $region8: #{tpu_custom_call.1} parent=1 // pred_region
      %22 = dma.done [#allocation3], 2048
    $region9: #{tpu_custom_call.1} parent=1 // pred_fallthru
      _
    %v23 = vld [vmem:[#allocation2] sm:$0xff]
    %v24 = vld [vmem:[#allocation2 + $0x8] sm:$0xff]
    %v25 = vld [vmem:[#allocation2 + $0x10] sm:$0xff]
    %v26 = vld [vmem:[#allocation2 + $0x18] sm:$0xff]
    %v27 = vld [vmem:[#allocation2 + $0x20] sm:$0xff]
    %v28 = vld [vmem:[#allocation2 + $0x28] sm:$0xff]
    %v29 = vld [vmem:[#allocation2 + $0x30] sm:$0xff]
    %v30 = vld [vmem:[#allocation2 + $0x38] sm:$0xff]
    %v31 = vld [vmem:[#allocation2 + $0x40] sm:$0xff]
    %v32 = vld [vmem:[#allocation2 + $0x48] sm:$0xff]
    %v33 = vld [vmem:[#allocation2 + $0x50] sm:$0xff]
    %v34 = vld [vmem:[#allocation2 + $0x58] sm:$0xff]
    %v35 = vld [vmem:[#allocation2 + $0x60] sm:$0xff]
    %v36 = vld [vmem:[#allocation2 + $0x68] sm:$0xff]
    %v37 = vld [vmem:[#allocation2 + $0x70] sm:$0xff]
    %v38 = vld [vmem:[#allocation2 + $0x78] sm:$0xff]
    %v39 = vmul.f32 %v23, %v23
    %v40 = vmul.f32 %v24, %v24
    %v41 = vmul.f32 %v25, %v25
    %v42 = vmul.f32 %v26, %v26
    %v43 = vmul.f32 %v27, %v27
    %v44 = vmul.f32 %v28, %v28
    %v45 = vmul.f32 %v29, %v29
    %v46 = vmul.f32 %v30, %v30
    %v47 = vmul.f32 %v31, %v31
    %v48 = vmul.f32 %v32, %v32
    %v49 = vmul.f32 %v33, %v33
    %v50 = vmul.f32 %v34, %v34
    %v51 = vmul.f32 %v35, %v35
    %v52 = vmul.f32 %v36, %v36
    %v53 = vmul.f32 %v37, %v37
    %v54 = vmul.f32 %v38, %v38
    %v55 = vrot.slane %v39, 4
    %v56 = vadd.f32 %v39, %v55
    %v57 = vrot.slane %v56, 2
    %v58 = vadd.f32 %v56, %v57
    %v59 = vrot.slane %v58, 1
    %v60 = vadd.f32 %v58, %v59
    %v61 = vrot.slane %v40, 4
    %v62 = vadd.f32 %v40, %v61
    %v63 = vrot.slane %v62, 2
    %v64 = vadd.f32 %v62, %v63
    %v65 = vrot.slane %v64, 1
    %v66 = vadd.f32 %v64, %v65
    %v67 = vrot.slane %v41, 4
    %v68 = vadd.f32 %v41, %v67
    %v69 = vrot.slane %v68, 2
    %v70 = vadd.f32 %v68, %v69
    %v71 = vrot.slane %v70, 1
    %v72 = vadd.f32 %v70, %v71
    %v73 = vrot.slane %v42, 4
    %v74 = vadd.f32 %v42, %v73
    %v75 = vrot.slane %v74, 2
    %v76 = vadd.f32 %v74, %v75
    %v77 = vrot.slane %v76, 1
    %v78 = vadd.f32 %v76, %v77
    %v79 = vrot.slane %v43, 4
    %v80 = vadd.f32 %v43, %v79
    %v81 = vrot.slane %v80, 2
    %v82 = vadd.f32 %v80, %v81
    %v83 = vrot.slane %v82, 1
    %v84 = vadd.f32 %v82, %v83
    %v85 = vrot.slane %v44, 4
    %v86 = vadd.f32 %v44, %v85
    %v87 = vrot.slane %v86, 2
    %v88 = vadd.f32 %v86, %v87
    %v89 = vrot.slane %v88, 1
    %v90 = vadd.f32 %v88, %v89
    %v91 = vrot.slane %v45, 4
    %v92 = vadd.f32 %v45, %v91
    %v93 = vrot.slane %v92, 2
    %v94 = vadd.f32 %v92, %v93
    %v95 = vrot.slane %v94, 1
    %v96 = vadd.f32 %v94, %v95
    %v97 = vrot.slane %v46, 4
    %v98 = vadd.f32 %v46, %v97
    %v99 = vrot.slane %v98, 2
    %v100 = vadd.f32 %v98, %v99
    %v101 = vrot.slane %v100, 1
    %v102 = vadd.f32 %v100, %v101
    %v103 = vrot.slane %v47, 4
    %v104 = vadd.f32 %v47, %v103
    %v105 = vrot.slane %v104, 2
    %v106 = vadd.f32 %v104, %v105
    %v107 = vrot.slane %v106, 1
    %v108 = vadd.f32 %v106, %v107
    %v109 = vrot.slane %v48, 4
    %v110 = vadd.f32 %v48, %v109
    %v111 = vrot.slane %v110, 2
    %v112 = vadd.f32 %v110, %v111
    %v113 = vrot.slane %v112, 1
    %v114 = vadd.f32 %v112, %v113
    %v115 = vrot.slane %v49, 4
    %v116 = vadd.f32 %v49, %v115
    %v117 = vrot.slane %v116, 2
    %v118 = vadd.f32 %v116, %v117
    %v119 = vrot.slane %v118, 1
    %v120 = vadd.f32 %v118, %v119
    %v121 = vrot.slane %v50, 4
    %v122 = vadd.f32 %v50, %v121
    %v123 = vrot.slane %v122, 2
    %v124 = vadd.f32 %v122, %v123
    %v125 = vrot.slane %v124, 1
    %v126 = vadd.f32 %v124, %v125
    %v127 = vrot.slane %v51, 4
    %v128 = vadd.f32 %v51, %v127
    %v129 = vrot.slane %v128, 2
    %v130 = vadd.f32 %v128, %v129
    %v131 = vrot.slane %v130, 1
    %v132 = vadd.f32 %v130, %v131
    %v133 = vrot.slane %v52, 4
    %v134 = vadd.f32 %v52, %v133
    %v135 = vrot.slane %v134, 2
    %v136 = vadd.f32 %v134, %v135
    %v137 = vrot.slane %v136, 1
    %v138 = vadd.f32 %v136, %v137
    %v139 = vrot.slane %v53, 4
    %v140 = vadd.f32 %v53, %v139
    %v141 = vrot.slane %v140, 2
    %v142 = vadd.f32 %v140, %v141
    %v143 = vrot.slane %v142, 1
    %v144 = vadd.f32 %v142, %v143
    %v145 = vrot.slane %v54, 4
    %v146 = vadd.f32 %v54, %v145
    %v147 = vrot.slane %v146, 2
    %v148 = vadd.f32 %v146, %v147
    %v149 = vrot.slane %v148, 1
    %v150 = vadd.f32 %v148, %v149
    %v151 = vrsqrt.pop %v60
    %v152 = vmul.f32 %v60, %v151
    %vm153 = vcmp.eq.f32.partialorder %v60, inf
    %v154 = vsel %vm153, %v60, %v152
    %vm155 = vcmp.eq.f32.partialorder %v60, 0.0
    %v156 = vand.u32 %v60, 2147483648
    %v157 = vsel %vm155, %v156, %v154
    %v158 = vrsqrt.pop %v66
    %v159 = vmul.f32 %v66, %v158
    %vm160 = vcmp.eq.f32.partialorder %v66, inf
    %v161 = vsel %vm160, %v66, %v159
    %vm162 = vcmp.eq.f32.partialorder %v66, 0.0
    %v163 = vand.u32 %v66, 2147483648
    %v164 = vsel %vm162, %v163, %v161
    %v165 = vrsqrt.pop %v72
    %v166 = vmul.f32 %v72, %v165
    %vm167 = vcmp.eq.f32.partialorder %v72, inf
    %v168 = vsel %vm167, %v72, %v166
    %vm169 = vcmp.eq.f32.partialorder %v72, 0.0
    %v170 = vand.u32 %v72, 2147483648
    %v171 = vsel %vm169, %v170, %v168
    %v172 = vrsqrt.pop %v78
    %v173 = vmul.f32 %v78, %v172
    %vm174 = vcmp.eq.f32.partialorder %v78, inf
    %v175 = vsel %vm174, %v78, %v173
    %vm176 = vcmp.eq.f32.partialorder %v78, 0.0
    %v177 = vand.u32 %v78, 2147483648
    %v178 = vsel %vm176, %v177, %v175
    %v179 = vrsqrt.pop %v84
    %v180 = vmul.f32 %v84, %v179
    %vm181 = vcmp.eq.f32.partialorder %v84, inf
    %v182 = vsel %vm181, %v84, %v180
    %vm183 = vcmp.eq.f32.partialorder %v84, 0.0
    %v184 = vand.u32 %v84, 2147483648
    %v185 = vsel %vm183, %v184, %v182
    %v186 = vrsqrt.pop %v90
    %v187 = vmul.f32 %v90, %v186
    %vm188 = vcmp.eq.f32.partialorder %v90, inf
    %v189 = vsel %vm188, %v90, %v187
    %vm190 = vcmp.eq.f32.partialorder %v90, 0.0
    %v191 = vand.u32 %v90, 2147483648
    %v192 = vsel %vm190, %v191, %v189
    %v193 = vrsqrt.pop %v96
    %v194 = vmul.f32 %v96, %v193
    %vm195 = vcmp.eq.f32.partialorder %v96, inf
    %v196 = vsel %vm195, %v96, %v194
    %vm197 = vcmp.eq.f32.partialorder %v96, 0.0
    %v198 = vand.u32 %v96, 2147483648
    %v199 = vsel %vm197, %v198, %v196
    %v200 = vrsqrt.pop %v102
    %v201 = vmul.f32 %v102, %v200
    %vm202 = vcmp.eq.f32.partialorder %v102, inf
    %v203 = vsel %vm202, %v102, %v201
    %vm204 = vcmp.eq.f32.partialorder %v102, 0.0
    %v205 = vand.u32 %v102, 2147483648
    %v206 = vsel %vm204, %v205, %v203
    %v207 = vrsqrt.pop %v108
    %v208 = vmul.f32 %v108, %v207
    %vm209 = vcmp.eq.f32.partialorder %v108, inf
    %v210 = vsel %vm209, %v108, %v208
    %vm211 = vcmp.eq.f32.partialorder %v108, 0.0
    %v212 = vand.u32 %v108, 2147483648
    %v213 = vsel %vm211, %v212, %v210
    %v214 = vrsqrt.pop %v114
    %v215 = vmul.f32 %v114, %v214
    %vm216 = vcmp.eq.f32.partialorder %v114, inf
    %v217 = vsel %vm216, %v114, %v215
    %vm218 = vcmp.eq.f32.partialorder %v114, 0.0
    %v219 = vand.u32 %v114, 2147483648
    %v220 = vsel %vm218, %v219, %v217
    %v221 = vrsqrt.pop %v120
    %v222 = vmul.f32 %v120, %v221
    %vm223 = vcmp.eq.f32.partialorder %v120, inf
    %v224 = vsel %vm223, %v120, %v222
    %vm225 = vcmp.eq.f32.partialorder %v120, 0.0
    %v226 = vand.u32 %v120, 2147483648
    %v227 = vsel %vm225, %v226, %v224
    %v228 = vrsqrt.pop %v126
    %v229 = vmul.f32 %v126, %v228
    %vm230 = vcmp.eq.f32.partialorder %v126, inf
    %v231 = vsel %vm230, %v126, %v229
    %vm232 = vcmp.eq.f32.partialorder %v126, 0.0
    %v233 = vand.u32 %v126, 2147483648
    %v234 = vsel %vm232, %v233, %v231
    %v235 = vrsqrt.pop %v132
    %v236 = vmul.f32 %v132, %v235
    %vm237 = vcmp.eq.f32.partialorder %v132, inf
    %v238 = vsel %vm237, %v132, %v236
    %vm239 = vcmp.eq.f32.partialorder %v132, 0.0
    %v240 = vand.u32 %v132, 2147483648
    %v241 = vsel %vm239, %v240, %v238
    %v242 = vrsqrt.pop %v138
    %v243 = vmul.f32 %v138, %v242
    %vm244 = vcmp.eq.f32.partialorder %v138, inf
    %v245 = vsel %vm244, %v138, %v243
    %vm246 = vcmp.eq.f32.partialorder %v138, 0.0
    %v247 = vand.u32 %v138, 2147483648
    %v248 = vsel %vm246, %v247, %v245
    %v249 = vrsqrt.pop %v144
    %v250 = vmul.f32 %v144, %v249
    %vm251 = vcmp.eq.f32.partialorder %v144, inf
    %v252 = vsel %vm251, %v144, %v250
    %vm253 = vcmp.eq.f32.partialorder %v144, 0.0
    %v254 = vand.u32 %v144, 2147483648
    %v255 = vsel %vm253, %v254, %v252
    %v256 = vrsqrt.pop %v150
    %v257 = vmul.f32 %v150, %v256
    %vm258 = vcmp.eq.f32.partialorder %v150, inf
    %v259 = vsel %vm258, %v150, %v257
    %vm260 = vcmp.eq.f32.partialorder %v150, 0.0
    %v261 = vand.u32 %v150, 2147483648
    %v262 = vsel %vm260, %v261, %v259
    %v263 = vadd.f32 %v60, 1.0001
    %v264 = vadd.f32 %v66, 1.0001
    %v265 = vadd.f32 %v72, 1.0001
    %v266 = vadd.f32 %v78, 1.0001
    %v267 = vadd.f32 %v84, 1.0001
    %v268 = vadd.f32 %v90, 1.0001
    %v269 = vadd.f32 %v96, 1.0001
    %v270 = vadd.f32 %v102, 1.0001
    %v271 = vadd.f32 %v108, 1.0001
    %v272 = vadd.f32 %v114, 1.0001
    %v273 = vadd.f32 %v120, 1.0001
    %v274 = vadd.f32 %v126, 1.0001
    %v275 = vadd.f32 %v132, 1.0001
    %v276 = vadd.f32 %v138, 1.0001
    %v277 = vadd.f32 %v144, 1.0001
    %v278 = vadd.f32 %v150, 1.0001
    %v279 = vrcp.pop %v263
    %v280 = vmul.f32 %v157, %v279
    %v281 = vrcp.pop %v264
    %v282 = vmul.f32 %v164, %v281
    %v283 = vrcp.pop %v265
    %v284 = vmul.f32 %v171, %v283
    %v285 = vrcp.pop %v266
    %v286 = vmul.f32 %v178, %v285
    %v287 = vrcp.pop %v267
    %v288 = vmul.f32 %v185, %v287
    %v289 = vrcp.pop %v268
    %v290 = vmul.f32 %v192, %v289
    %v291 = vrcp.pop %v269
    %v292 = vmul.f32 %v199, %v291
    %v293 = vrcp.pop %v270
    %v294 = vmul.f32 %v206, %v293
    %v295 = vrcp.pop %v271
    %v296 = vmul.f32 %v213, %v295
    %v297 = vrcp.pop %v272
    %v298 = vmul.f32 %v220, %v297
    %v299 = vrcp.pop %v273
    %v300 = vmul.f32 %v227, %v299
    %v301 = vrcp.pop %v274
    %v302 = vmul.f32 %v234, %v301
    %v303 = vrcp.pop %v275
    %v304 = vmul.f32 %v241, %v303
    %v305 = vrcp.pop %v276
    %v306 = vmul.f32 %v248, %v305
    %v307 = vrcp.pop %v277
    %v308 = vmul.f32 %v255, %v307
    %v309 = vrcp.pop %v278
    %v310 = vmul.f32 %v262, %v309
    %v311 = vmul.f32 %v23, %v280
    %v312 = vmul.f32 %v24, %v282
    %v313 = vmul.f32 %v25, %v284
    %v314 = vmul.f32 %v26, %v286
    %v315 = vmul.f32 %v27, %v288
    %v316 = vmul.f32 %v28, %v290
    %v317 = vmul.f32 %v29, %v292
    %v318 = vmul.f32 %v30, %v294
    %v319 = vmul.f32 %v31, %v296
    %v320 = vmul.f32 %v32, %v298
    %v321 = vmul.f32 %v33, %v300
    %v322 = vmul.f32 %v34, %v302
    %v323 = vmul.f32 %v35, %v304
    %v324 = vmul.f32 %v36, %v306
    %v325 = vmul.f32 %v37, %v308
    %v326 = vmul.f32 %v38, %v310
    %327 = vst [vmem:[#allocation5] sm:$0xff] %v311
    %328 = vst [vmem:[#allocation5 + $0x8] sm:$0xff] %v312
    %329 = vst [vmem:[#allocation5 + $0x10] sm:$0xff] %v313
    %330 = vst [vmem:[#allocation5 + $0x18] sm:$0xff] %v314
    %331 = vst [vmem:[#allocation5 + $0x20] sm:$0xff] %v315
    %332 = vst [vmem:[#allocation5 + $0x28] sm:$0xff] %v316
    %333 = vst [vmem:[#allocation5 + $0x30] sm:$0xff] %v317
    %334 = vst [vmem:[#allocation5 + $0x38] sm:$0xff] %v318
    %335 = vst [vmem:[#allocation5 + $0x40] sm:$0xff] %v319
    %336 = vst [vmem:[#allocation5 + $0x48] sm:$0xff] %v320
    %337 = vst [vmem:[#allocation5 + $0x50] sm:$0xff] %v321
    %338 = vst [vmem:[#allocation5 + $0x58] sm:$0xff] %v322
    %339 = vst [vmem:[#allocation5 + $0x60] sm:$0xff] %v323
    %340 = vst [vmem:[#allocation5 + $0x68] sm:$0xff] %v324
    %341 = vst [vmem:[#allocation5 + $0x70] sm:$0xff] %v325
    %342 = vst [vmem:[#allocation5 + $0x78] sm:$0xff] %v326
    // Predicated region
    $region10: #{tpu_custom_call.1} parent=1 // pred_check
      _
    $region11: #{tpu_custom_call.1} parent=1 // pred_check_branch
      %344 = sbr.rel (0) target = $region13
    $region12: #{tpu_custom_call.1} parent=1 // pred_region
      %s346 = ssub.s32 2048, 2048
      %347 = vsyncadd [#allocation4], %s346
      %s348 = sshll.u32 [#allocation5], 4
      %s349 = int_to_ptr.vmem [resolvable:$true] %s348
      %354 = dma.vmem_to_hbm [thread:$0]  %s349, 2048, %s1, [#allocation4], 256, 256, 16
    $region13: #{tpu_custom_call.1} parent=1 // pred_fallthru
      _
    // Predicated region
    $region14: #{tpu_custom_call.1} parent=1 // pred_check
      _
    $region15: #{tpu_custom_call.1} parent=1 // pred_check_branch
      %356 = sbr.rel (0) target = $region17
    $region16: #{tpu_custom_call.1} parent=1 // pred_region
      %357 = dma.done [#allocation4], 2048
    $region17: #{tpu_custom_call.1} parent=1 // pred_fallthru
      _
    %358 = vsyncpa [#allocation3], 1
    %359 = vsyncpa [#allocation4], 1

</llo_original>
